<compile_context>
chip_gen: v5e
topology: v5e:2x2
jax: 0.10.0
libtpu: 0.0.40
codegen_flags: <defaults>
</compile_context>

<pallas_src>
import functools

import jax
import jax.numpy as jnp
from jax.experimental import pallas as pl
from jax.experimental.pallas import tpu as pltpu


def _round_up(x, m):
    return ((x + m - 1) // m) * m


def _pick_block_b(B, max_bt=8):
    """Largest batch tile <= max_bt that divides B and leaves >=2 grid steps."""
    best = 1
    for bt in range(1, min(B, max_bt) + 1):
        if B % bt == 0 and B // bt >= 2:
            best = bt
    return best


def _vmem_limit_bytes(block_b, n_pad, dim, head_dim, compute_bytes, out_bytes):
    rows = block_b * n_pad
    est = 0
    est += 2 * rows * dim * compute_bytes            # x block (double buffered)
    est += 2 * rows * dim * out_bytes                # out block (double buffered)
    est += 2 * (4 * dim * head_dim + dim) * compute_bytes  # weight slabs + bias
    est += rows * dim * 4                            # f32 accumulator scratch
    est += 3 * rows * max(head_dim, 128) * 4         # q/k/v intermediates
    est += 2 * block_b * n_pad * n_pad * 4           # scores + probs
    est += rows * dim * 4                            # proj contribution temp
    est = 2 * est + (8 << 20)                        # headroom (relayouts, compiler scratch)
    return int(min(max(est, 32 << 20), 64 << 20))


def _attention_kernel(x_ref, wqkv_ref, wproj_ref, b_ref, o_ref, acc_ref,
                      *, num_heads, head_dim, dim, block_b, n_pad, n_valid):
    # x_ref:     (block_b, n_pad, dim)     compute dtype (f32 or bf16)
    # wqkv_ref:  (3, 1, dim, head_dim)     this head's q/k/v weight slabs
    # wproj_ref: (1, head_dim, dim)        this head's proj weight rows
    # b_ref:     (1, dim)                  proj bias (f32)
    # o_ref:     (block_b, n_pad, dim)     output (original dtype)
    # acc_ref:   (block_b*n_pad, dim)      f32 output-projection accumulator
    h = pl.program_id(1)

    @pl.when(h == 0)
    def _init():
        acc_ref[...] = jnp.zeros_like(acc_ref)

    cdt = x_ref.dtype
    rows = block_b * n_pad
    x2 = x_ref[...].reshape(rows, dim)

    # Per-head q/k/v projections straight from (dim, head_dim) weight slabs.
    # (softmax scale is already folded into the Q slab on the host.)
    q = jnp.dot(x2, wqkv_ref[0, 0], preferred_element_type=jnp.float32)
    k = jnp.dot(x2, wqkv_ref[1, 0], preferred_element_type=jnp.float32)
    v = jnp.dot(x2, wqkv_ref[2, 0], preferred_element_type=jnp.float32)
    q = q.reshape(block_b, n_pad, head_dim).astype(cdt)
    k = k.reshape(block_b, n_pad, head_dim).astype(cdt)
    v = v.reshape(block_b, n_pad, head_dim).astype(cdt)

    # Scores without materializing k^T (contract on head_dim).
    s = jnp.einsum('bnd,bmd->bnm', q, k, preferred_element_type=jnp.float32)

    if n_pad != n_valid:
        col = jax.lax.broadcasted_iota(jnp.int32, (n_pad, n_pad), 1)
        s = jnp.where((col < n_valid)[None, :, :], s, jnp.float32(-1e30))

    # Softmax in f32; divide replaced by EUP approximate reciprocal.
    m = jnp.max(s, axis=-1, keepdims=True)
    p = jnp.exp(s - m)
    denom = jnp.sum(p, axis=-1, keepdims=True)
    p = p * pl.reciprocal(denom, approx=True)

    o_h = jnp.einsum('bnm,bmd->bnd', p.astype(cdt), v,
                     preferred_element_type=jnp.float32)

    # This head's contribution to the output projection.
    acc_ref[...] += jnp.dot(o_h.reshape(rows, head_dim).astype(cdt),
                            wproj_ref[0],
                            preferred_element_type=jnp.float32)

    @pl.when(h == num_heads - 1)
    def _finalize():
        out = acc_ref[...] + b_ref[...]
        o_ref[...] = out.reshape(block_b, n_pad, dim).astype(o_ref.dtype)


def prepare_attention_params(w_qkv, w_proj, b_proj, *, num_heads,
                             compute_dtype=jnp.float32):
    """One-time host-side transform from nn.Linear layout to kernel layout."""
    three_c, C = w_qkv.shape
    assert three_c == 3 * C
    head_dim = C // num_heads
    scale = head_dim ** (-0.5)
    # nn.Linear computes x @ W.T; the module's reshape(B,N,3,H,hd) orders the
    # 3C output features as (3, heads, head_dim).
    w_qkv_k = jnp.transpose(w_qkv.T.reshape(C, 3, num_heads, head_dim),
                            (1, 2, 0, 3))                 # (3, H, C, hd)
    w_qkv_k = w_qkv_k.at[0].multiply(scale)               # fold scale into Q
    w_proj_k = w_proj.T.reshape(num_heads, head_dim, C)   # (H, hd, C)
    b_proj_k = b_proj.reshape(1, C).astype(jnp.float32)   # bias added in f32
    return (w_qkv_k.astype(compute_dtype),
            w_proj_k.astype(compute_dtype),
            b_proj_k)


def attention_forward(x, w_qkv_k, w_proj_k, b_proj_k, *, num_heads,
                      block_b=None):
    B, N, C = x.shape
    head_dim = C // num_heads
    compute_dtype = w_qkv_k.dtype
    n_pad = _round_up(N, 128)          # lane-dense key/score axis

    if block_b is None:
        block_b = _pick_block_b(B)
    assert B % block_b == 0

    x_p = x
    if n_pad != N:
        x_p = jnp.pad(x, ((0, 0), (0, n_pad - N), (0, 0)))
    x_p = x_p.astype(compute_dtype)

    rows = block_b * n_pad
    vmem = _vmem_limit_bytes(block_b, n_pad, C, head_dim,
                             jnp.dtype(compute_dtype).itemsize,
                             jnp.dtype(x.dtype).itemsize)

    kernel = functools.partial(_attention_kernel, num_heads=num_heads,
                               head_dim=head_dim, dim=C, block_b=block_b,
                               n_pad=n_pad, n_valid=N)

    out = pl.pallas_call(
        kernel,
        out_shape=jax.ShapeDtypeStruct((B, n_pad, C), x.dtype),
        grid_spec=pltpu.PrefetchScalarGridSpec(
            num_scalar_prefetch=0,
            grid=(B // block_b, num_heads),
            in_specs=[
                pl.BlockSpec((block_b, n_pad, C), lambda b, h: (b, 0, 0)),   # x
                pl.BlockSpec((3, 1, C, head_dim), lambda b, h: (0, h, 0, 0)),  # qkv W
                pl.BlockSpec((1, head_dim, C), lambda b, h: (h, 0, 0)),      # proj W
                pl.BlockSpec((1, C), lambda b, h: (0, 0)),                   # proj b
            ],
            out_specs=pl.BlockSpec((block_b, n_pad, C), lambda b, h: (b, 0, 0)),
            scratch_shapes=[pltpu.VMEM((rows, C), jnp.float32)],
        ),
        compiler_params=pltpu.CompilerParams(
            dimension_semantics=("parallel", "arbitrary"),
            vmem_limit_bytes=vmem),
    )(x_p, w_qkv_k, w_proj_k, b_proj_k)

    if n_pad != N:
        out = out[:, :N, :]
    return out


def attention_reference(x, w_qkv, w_proj, b_proj, *, num_heads):
    """Pure-JAX mirror of the PyTorch forward (nn.Linear layout weights)."""
    B, N, C = x.shape
    head_dim = C // num_heads
    scale = head_dim ** (-0.5)
    qkv = x @ w_qkv.T                                            # (B, N, 3C)
    qkv = qkv.reshape(B, N, 3, num_heads, head_dim).transpose(2, 0, 3, 1, 4)
    q, k, v = qkv[0], qkv[1], qkv[2]                             # (B, H, N, hd)
    attn = jax.nn.softmax((q * scale) @ jnp.swapaxes(k, -2, -1), axis=-1)
    out = (attn @ v).transpose(0, 2, 1, 3).reshape(B, N, C)
    return out @ w_proj.T + b_proj


if __name__ == "__main__":
    B, N, C = 2, 8, 32
    num_heads = 4

    key = jax.random.PRNGKey(0)
    kx, kqkv, kproj, kb = jax.random.split(key, 4)

    x = jax.random.normal(kx, (B, N, C), dtype=jnp.float32)
    # nn.Linear-layout weights (out_features, in_features), deterministic init.
    w_qkv = jax.random.normal(kqkv, (3 * C, C), dtype=jnp.float32) * 0.02
    w_proj = jax.random.normal(kproj, (C, C), dtype=jnp.float32) * 0.02
    b_proj = jax.random.normal(kb, (C,), dtype=jnp.float32) * 0.02

    ref = attention_reference(x, w_qkv, w_proj, b_proj, num_heads=num_heads)

    # f32 compute path.
    p32 = prepare_attention_params(w_qkv, w_proj, b_proj, num_heads=num_heads,
                                   compute_dtype=jnp.float32)
    out32 = jax.block_until_ready(
        attention_forward(x, *p32, num_heads=num_heads))
    assert out32.shape == (B, N, C)
    assert jnp.allclose(out32, ref, atol=2e-3, rtol=2e-3), "f32 mismatch vs reference"

    # bf16 MXU-operand path (f32 accumulation + f32 softmax inside the kernel).
    p16 = prepare_attention_params(w_qkv, w_proj, b_proj, num_heads=num_heads,
                                   compute_dtype=jnp.bfloat16)
    out16 = jax.block_until_ready(
        attention_forward(x, *p16, num_heads=num_heads))
    assert out16.shape == (B, N, C)
    assert jnp.allclose(out16, ref, atol=1e-2, rtol=5e-2), "bf16 mismatch vs reference"

    print("KERNEL_OK")
</pallas_src>

<mosaic_0001>
module attributes {stable_mosaic.version = 11 : i64} {
  func.func @_attention_kernel(%arg0: i32, %arg1: i32, %arg2: memref<1x128x32xf32, #tpu.memory_space<vmem>>, %arg3: memref<3x1x32x8xf32, #tpu.memory_space<vmem>>, %arg4: memref<1x8x32xf32, #tpu.memory_space<vmem>>, %arg5: memref<1x32xf32, #tpu.memory_space<vmem>>, %arg6: memref<1x128x32xf32, #tpu.memory_space<vmem>>, %arg7: memref<128x32xf32, #tpu.memory_space<vmem>>) attributes {dimension_semantics = [#tpu.dimension_semantics<parallel>, #tpu.dimension_semantics<arbitrary>], iteration_bounds = array<i64: 2, 4>, scalar_prefetch = 0 : i64, scratch_operands = 1 : i64, tpu.core_type = #tpu.core_type<tc>, window_params = [{transform_indices = @transform_0, window_bounds = array<i64: 1, 128, 32>}, {transform_indices = @transform_1, window_bounds = array<i64: 3, 1, 32, 8>}, {transform_indices = @transform_2, window_bounds = array<i64: 1, 8, 32>}, {pipeline_mode = #tpu.pipeline_mode<synchronous>, transform_indices = @transform_3, window_bounds = array<i64: 1, 32>}, {transform_indices = @transform_4, window_bounds = array<i64: 1, 128, 32>}]} {
    %c0_i32 = arith.constant 0 : i32
    %0 = arith.cmpi eq, %arg1, %c0_i32 : i32
    %1 = arith.extui %0 : i1 to i32
    %c0_i32_0 = arith.constant 0 : i32
    %2 = arith.cmpi ne, %1, %c0_i32_0 : i32
    scf.if %2 {
      %cst_29 = arith.constant 0.000000e+00 : f32
      %45 = vector.broadcast %cst_29 : f32 to vector<128x32xf32>
      %c0_30 = arith.constant 0 : index
      %c0_31 = arith.constant 0 : index
      %46 = vector.load %arg7[%c0_30, %c0_31] : memref<128x32xf32, #tpu.memory_space<vmem>>, vector<128x32xf32>
      tpu.vector_store %arg7[%c0_30, %c0_31], %45 {strides = array<i32>} : memref<128x32xf32, #tpu.memory_space<vmem>>, vector<128x32xf32>,
    } else {
    }
    %c0 = arith.constant 0 : index
    %c0_1 = arith.constant 0 : index
    %c0_2 = arith.constant 0 : index
    %3 = vector.load %arg2[%c0, %c0_1, %c0_2] : memref<1x128x32xf32, #tpu.memory_space<vmem>>, vector<1x128x32xf32>
    %4 = vector.shape_cast %3 : vector<1x128x32xf32> to vector<128x32xf32>
    %c0_3 = arith.constant 0 : index
    %c0_4 = arith.constant 0 : index
    %c0_5 = arith.constant 0 : index
    %c0_6 = arith.constant 0 : index
    %5 = vector.load %arg3[%c0_3, %c0_4, %c0_5, %c0_6] : memref<3x1x32x8xf32, #tpu.memory_space<vmem>>, vector<1x1x32x8xf32>
    %6 = vector.shape_cast %5 : vector<1x1x32x8xf32> to vector<32x8xf32>
    %cst = arith.constant dense<0.000000e+00> : vector<128x8xf32>
    %7 = tpu.matmul %4, %6, %cst {dimension_numbers = #tpu.dot_dimension_numbers<[1], [0], [0], [1], [0, 0, 1, 1], [], []>} : vector<128x32xf32>, vector<32x8xf32>, vector<128x8xf32> -> vector<128x8xf32>
    %c1 = arith.constant 1 : index
    %c0_7 = arith.constant 0 : index
    %c0_8 = arith.constant 0 : index
    %c0_9 = arith.constant 0 : index
    %8 = vector.load %arg3[%c1, %c0_7, %c0_8, %c0_9] : memref<3x1x32x8xf32, #tpu.memory_space<vmem>>, vector<1x1x32x8xf32>
    %9 = vector.shape_cast %8 : vector<1x1x32x8xf32> to vector<32x8xf32>
    %cst_10 = arith.constant dense<0.000000e+00> : vector<128x8xf32>
    %10 = tpu.matmul %4, %9, %cst_10 {dimension_numbers = #tpu.dot_dimension_numbers<[1], [0], [0], [1], [0, 0, 1, 1], [], []>} : vector<128x32xf32>, vector<32x8xf32>, vector<128x8xf32> -> vector<128x8xf32>
    %c2 = arith.constant 2 : index
    %c0_11 = arith.constant 0 : index
    %c0_12 = arith.constant 0 : index
    %c0_13 = arith.constant 0 : index
    %11 = vector.load %arg3[%c2, %c0_11, %c0_12, %c0_13] : memref<3x1x32x8xf32, #tpu.memory_space<vmem>>, vector<1x1x32x8xf32>
    %12 = vector.shape_cast %11 : vector<1x1x32x8xf32> to vector<32x8xf32>
    %cst_14 = arith.constant dense<0.000000e+00> : vector<128x8xf32>
    %13 = tpu.matmul %4, %12, %cst_14 {dimension_numbers = #tpu.dot_dimension_numbers<[1], [0], [0], [1], [0, 0, 1, 1], [], []>} : vector<128x32xf32>, vector<32x8xf32>, vector<128x8xf32> -> vector<128x8xf32>
    %14 = vector.shape_cast %7 : vector<128x8xf32> to vector<1x128x8xf32>
    %15 = vector.shape_cast %10 : vector<128x8xf32> to vector<1x128x8xf32>
    %16 = vector.shape_cast %13 : vector<128x8xf32> to vector<1x128x8xf32>
    "tpu.trace_start"() <{level = 10 : i32, message = "bnd,bmd->bnm"}> : () -> ()
    %cst_15 = arith.constant dense<0.000000e+00> : vector<1x128x128xf32>
    %17 = tpu.matmul %14, %15, %cst_15 {dimension_numbers = #tpu.dot_dimension_numbers<[2], [2], [1], [1], [0, 0, 0, 1, 1, 1], [0], [0]>} : vector<1x128x8xf32>, vector<1x128x8xf32>, vector<1x128x128xf32> -> vector<1x128x128xf32>
    "tpu.trace_stop"() : () -> ()
    %18 = tpu.iota {dimensions = array<i32: 1>} : vector<128x128xi32>
    %c8_i32 = arith.constant 8 : i32
    %19 = vector.broadcast %c8_i32 : i32 to vector<128x128xi32>
    %20 = arith.cmpi slt, %18, %19 : vector<128x128xi32>
    %21 = vector.shape_cast %20 : vector<128x128xi1> to vector<1x128x128xi1>
    %cst_16 = arith.constant -1.000000e+30 : f32
    %22 = vector.broadcast %cst_16 : f32 to vector<1x128x128xf32>
    %23 = arith.select %21, %17, %22 : vector<1x128x128xi1>, vector<1x128x128xf32>
    %cst_17 = arith.constant dense<0xFF800000> : vector<1x128xf32>
    %24 = vector.multi_reduction <maximumf>, %23, %cst_17 [2] : vector<1x128x128xf32> to vector<1x128xf32>
    %25 = vector.shape_cast %24 : vector<1x128xf32> to vector<1x128x1xf32>
    %26 = vector.broadcast %25 : vector<1x128x1xf32> to vector<1x128x128xf32>
    %27 = arith.subf %23, %26 : vector<1x128x128xf32>
    %28 = math.exp %27 : vector<1x128x128xf32>
    %cst_18 = arith.constant dense<0.000000e+00> : vector<1x128xf32>
    %29 = vector.multi_reduction <add>, %28, %cst_18 [2] : vector<1x128x128xf32> to vector<1x128xf32>
    %30 = vector.shape_cast %29 : vector<1x128xf32> to vector<1x128x1xf32>
    %31 = tpu.reciprocal %30 {approx = true} : vector<1x128x1xf32> -> vector<1x128x1xf32>
    %32 = vector.broadcast %31 : vector<1x128x1xf32> to vector<1x128x128xf32>
    %33 = arith.mulf %28, %32 : vector<1x128x128xf32>
    "tpu.trace_start"() <{level = 10 : i32, message = "bnm,bmd->bnd"}> : () -> ()
    %cst_19 = arith.constant dense<0.000000e+00> : vector<1x128x8xf32>
    %34 = tpu.matmul %33, %16, %cst_19 {dimension_numbers = #tpu.dot_dimension_numbers<[2], [1], [1], [2], [0, 0, 0, 1, 1, 2], [0], [0]>} : vector<1x128x128xf32>, vector<1x128x8xf32>, vector<1x128x8xf32> -> vector<1x128x8xf32>
    "tpu.trace_stop"() : () -> ()
    %c0_20 = arith.constant 0 : index
    %c0_21 = arith.constant 0 : index
    %35 = vector.load %arg7[%c0_20, %c0_21] : memref<128x32xf32, #tpu.memory_space<vmem>>, vector<128x32xf32>
    %36 = vector.shape_cast %34 : vector<1x128x8xf32> to vector<128x8xf32>
    %c0_22 = arith.constant 0 : index
    %c0_23 = arith.constant 0 : index
    %c0_24 = arith.constant 0 : index
    %37 = vector.load %arg4[%c0_22, %c0_23, %c0_24] : memref<1x8x32xf32, #tpu.memory_space<vmem>>, vector<1x8x32xf32>
    %38 = vector.shape_cast %37 : vector<1x8x32xf32> to vector<8x32xf32>
    %cst_25 = arith.constant dense<0.000000e+00> : vector<128x32xf32>
    %39 = tpu.matmul %36, %38, %cst_25 {dimension_numbers = #tpu.dot_dimension_numbers<[1], [0], [0], [1], [0, 0, 1, 1], [], []>} : vector<128x8xf32>, vector<8x32xf32>, vector<128x32xf32> -> vector<128x32xf32>
    %40 = arith.addf %35, %39 : vector<128x32xf32>
    %c0_26 = arith.constant 0 : index
    %c0_27 = arith.constant 0 : index
    %41 = vector.load %arg7[%c0_26, %c0_27] : memref<128x32xf32, #tpu.memory_space<vmem>>, vector<128x32xf32>
    tpu.vector_store %arg7[%c0_26, %c0_27], %40 {strides = array<i32>} : memref<128x32xf32, #tpu.memory_space<vmem>>, vector<128x32xf32>,
    %c3_i32 = arith.constant 3 : i32
    %42 = arith.cmpi eq, %arg1, %c3_i32 : i32
    %43 = arith.extui %42 : i1 to i32
    %c0_i32_28 = arith.constant 0 : i32
    %44 = arith.cmpi ne, %43, %c0_i32_28 : i32
    scf.if %44 {
      %c0_29 = arith.constant 0 : index
      %c0_30 = arith.constant 0 : index
      %45 = vector.load %arg7[%c0_29, %c0_30] : memref<128x32xf32, #tpu.memory_space<vmem>>, vector<128x32xf32>
      %c0_31 = arith.constant 0 : index
      %c0_32 = arith.constant 0 : index
      %46 = vector.load %arg5[%c0_31, %c0_32] : memref<1x32xf32, #tpu.memory_space<vmem>>, vector<1x32xf32>
      %47 = vector.broadcast %46 : vector<1x32xf32> to vector<128x32xf32>
      %48 = arith.addf %45, %47 : vector<128x32xf32>
      %49 = vector.shape_cast %48 : vector<128x32xf32> to vector<1x128x32xf32>
      %c0_33 = arith.constant 0 : index
      %c0_34 = arith.constant 0 : index
      %c0_35 = arith.constant 0 : index
      %50 = vector.load %arg6[%c0_33, %c0_34, %c0_35] : memref<1x128x32xf32, #tpu.memory_space<vmem>>, vector<1x128x32xf32>
      tpu.vector_store %arg6[%c0_33, %c0_34, %c0_35], %49 {strides = array<i32>} : memref<1x128x32xf32, #tpu.memory_space<vmem>>, vector<1x128x32xf32>,
    } else {
    }
    return
  }
  func.func @transform_0(%arg0: i32, %arg1: i32) -> (i32, i32, i32) {
    %c0_i32 = arith.constant 0 : i32
    %c0_i32_0 = arith.constant 0 : i32
    %c0_i32_1 = arith.constant 0 : i32
    return %arg0, %c0_i32, %c0_i32_0 : i32, i32, i32
  }
  func.func @transform_1(%arg0: i32, %arg1: i32) -> (i32, i32, i32, i32) {
    %c0_i32 = arith.constant 0 : i32
    %c0_i32_0 = arith.constant 0 : i32
    %c0_i32_1 = arith.constant 0 : i32
    %c0_i32_2 = arith.constant 0 : i32
    return %c0_i32, %arg1, %c0_i32_0, %c0_i32_1 : i32, i32, i32, i32
  }
  func.func @transform_2(%arg0: i32, %arg1: i32) -> (i32, i32, i32) {
    %c0_i32 = arith.constant 0 : i32
    %c0_i32_0 = arith.constant 0 : i32
    %c0_i32_1 = arith.constant 0 : i32
    return %arg1, %c0_i32, %c0_i32_0 : i32, i32, i32
  }
  func.func @transform_3(%arg0: i32, %arg1: i32) -> (i32, i32) {
    %c0_i32 = arith.constant 0 : i32
    %c0_i32_0 = arith.constant 0 : i32
    %c0_i32_1 = arith.constant 0 : i32
    return %c0_i32, %c0_i32_0 : i32, i32
  }
  func.func @transform_4(%arg0: i32, %arg1: i32) -> (i32, i32, i32) {
    %c0_i32 = arith.constant 0 : i32
    %c0_i32_0 = arith.constant 0 : i32
    %c0_i32_1 = arith.constant 0 : i32
    return %arg0, %c0_i32, %c0_i32_0 : i32, i32, i32
  }
}

</mosaic_0001>

<llo_original>
// kernel: tpu_custom_call.1
$region0: #{tpu_custom_call.1}
  #allocation0 [shape = 'u32[]', space=smem, size = 0x4, offset = 0x4, fixed_abs, tag = 'smem constant byte address 0x4 - core index']
  #allocation1 [shape = 'u32[72,128]{1,0:T(1,128)}', space=vmem, size = 0x9000, scoped, tag = 'internal scratch']
  #allocation2 [shape = 'f32[128,32]{1,0:T(8,128)}', space=vmem, size = 0x10000, scoped, tag = 'scratch operand']
  %s0 = inlined_call_operand.vmem [shape: f32[2,128,32], index: 0, kind: input, shape index: {}]
  %s1 = inlined_call_operand.vmem [shape: f32[3,4,32,8], index: 1, kind: input, shape index: {}]
  %s2 = inlined_call_operand.vmem [shape: f32[4,8,32], index: 2, kind: input, shape index: {}]
  %s3 = inlined_call_operand.vmem [shape: f32[1,32], index: 3, kind: input, shape index: {}]
  %s4 = inlined_call_operand.vmem [shape: f32[2,128,32], index: 4, kind: output, shape index: {}]
  %s5 = sld [smem:[#allocation0]]
  $region95: #{tpu_custom_call.1} parent=0
    _
  %s7 = ssub.s32 1, %s5
  %s8 = scalar_select 0, %s7, %s5
  $region1: #{tpu_custom_call.1} parent=0
    #allocation3 [shape = 'u8[98304]{0}', space=vmem, size = 0x18000, scoped, tag = 'input window, operand 1']
    loop: start=0, step=1, limit=10
    $region2: #{tpu_custom_call.1} parent=1 // loop_pre_header
      _
    $region3: #{tpu_custom_call.1} parent=1 // loop_header
      %s10 = sphi 0, %s14
      %p11 = scmp.ge.s32.totalorder %s10, 10
      %s17 = sphi 0, %s29
      %s18 = sphi 0, %s25
      %s19 = sphi 0, %s17
      %s20 = sphi 0, %s18
      %s21 = sphi 0, %s19
      %s22 = sphi 0, %s20
      %s32 = sphi 0, %s34
      %s35 = sphi 0, %s32
      %s36 = sphi 0, %s35
      %s52 = sphi 0, %s36
      %s58 = sphi 0, %s60
      %s61 = sphi 0, %s58
      %s62 = sphi 0, %s61
      %s78 = sphi 0, %s62
      %s84 = sphi 0, %s86
      %s87 = sphi 0, %s84
      %s88 = sphi 0, %s87
      %s104 = sphi 0, %s88
      %s108 = sphi 0, %s108
      %s110 = sphi 0, %s108
      %s111 = sphi 0, %s110
      %s125 = sphi 0, %s111
      %s131 = sphi 0, %s133
      %s134 = sphi 0, %s131
      %s135 = sphi 0, %s134
      %s151 = sphi 0, %s135
    $region4: #{tpu_custom_call.1} parent=1 // loop_header_branch
      %13 = sbr.rel (%p11) target = $region8
    $region5: #{tpu_custom_call.1} parent=1 // loop_body
      %s15 = ssub.s32 %s10, 1
      %s16 = ssub.s32 %s10, 2
      %s23 = sadd.s32 1, %s18
      %p24 = scmp.ge.s32.totalorder %s23, 4
      %s25 = scalar_select %p24, 0, %s23
      %s26 = sadd.s32 1, %s17
      %s27 = scalar_select %p24, %s26, %s17
      %p28 = scmp.ge.s32.totalorder %s27, 2
      %s29 = scalar_select %p28, 0, %s27
      %s30 = ssub.s32 %s17, %s29
      %p31 = scmp.eq.s32.totalorder %s30, 0
      %s33 = sadd.s32 %s32, 1
      %s34 = scalar_select %p31, %s32, %s33
      %p37 = pneg %p31
      %p38 = scmp.eq.s32.totalorder %s10, 7
      %p39 = por %p37, %p38
      %p40 = scmp.ne.s32.totalorder %s32, %s35
      %p41 = scmp.eq.s32.totalorder %s10, 0
      %p42 = por %p40, %p41
      %p43 = scmp.ne.s32.totalorder %s32, %s35
      %p44 = scmp.eq.s32.totalorder %s15, 7
      %p45 = por %p43, %p44
      %p46 = scmp.ne.s32.totalorder %s35, %s36
      %p47 = scmp.eq.s32.totalorder %s15, 0
      %p48 = por %p46, %p47
      %p49 = scmp.ne.s32.totalorder %s35, %s36
      %p50 = scmp.eq.s32.totalorder %s16, 7
      %p51 = por %p49, %p50
      %p53 = scmp.ne.s32.totalorder %s36, %s52
      %p54 = scmp.eq.s32.totalorder %s16, 0
      %p55 = por %p53, %p54
      %s56 = ssub.s32 %s18, %s25
      %p57 = scmp.eq.s32.totalorder %s56, 0
      %s59 = sadd.s32 %s58, 1
      %s60 = scalar_select %p57, %s58, %s59
      %p63 = pneg %p57
      %p64 = scmp.eq.s32.totalorder %s10, 7
      %p65 = por %p63, %p64
      %p66 = scmp.ne.s32.totalorder %s58, %s61
      %p67 = scmp.eq.s32.totalorder %s10, 0
      %p68 = por %p66, %p67
      %p69 = scmp.ne.s32.totalorder %s58, %s61
      %p70 = scmp.eq.s32.totalorder %s15, 7
      %p71 = por %p69, %p70
      %p72 = scmp.ne.s32.totalorder %s61, %s62
      %p73 = scmp.eq.s32.totalorder %s15, 0
      %p74 = por %p72, %p73
      %p75 = scmp.ne.s32.totalorder %s61, %s62
      %p76 = scmp.eq.s32.totalorder %s16, 7
      %p77 = por %p75, %p76
      %p79 = scmp.ne.s32.totalorder %s62, %s78
      %p80 = scmp.eq.s32.totalorder %s16, 0
      %p81 = por %p79, %p80
      %s82 = ssub.s32 %s18, %s25
      %p83 = scmp.eq.s32.totalorder %s82, 0
      %s85 = sadd.s32 %s84, 1
      %s86 = scalar_select %p83, %s84, %s85
      %p89 = pneg %p83
      %p90 = scmp.eq.s32.totalorder %s10, 7
      %p91 = por %p89, %p90
      %p92 = scmp.ne.s32.totalorder %s84, %s87
      %p93 = scmp.eq.s32.totalorder %s10, 0
      %p94 = por %p92, %p93
      %p95 = scmp.ne.s32.totalorder %s84, %s87
      %p96 = scmp.eq.s32.totalorder %s15, 7
      %p97 = por %p95, %p96
      %p98 = scmp.ne.s32.totalorder %s87, %s88
      %p99 = scmp.eq.s32.totalorder %s15, 0
      %p100 = por %p98, %p99
      %p101 = scmp.ne.s32.totalorder %s87, %s88
      %p102 = scmp.eq.s32.totalorder %s16, 7
      %p103 = por %p101, %p102
      %p105 = scmp.ne.s32.totalorder %s88, %s104
      %p106 = scmp.eq.s32.totalorder %s16, 0
      %p107 = por %p105, %p106
      %s109 = sadd.s32 %s108, 1
      %p112 = scmp.eq.s32.totalorder %s10, 7
      %p113 = scmp.ne.s32.totalorder %s108, %s110
      %p114 = scmp.eq.s32.totalorder %s10, 0
      %p115 = por %p113, %p114
      %p116 = scmp.ne.s32.totalorder %s108, %s110
      %p117 = scmp.eq.s32.totalorder %s15, 7
      %p118 = por %p116, %p117
      %p119 = scmp.ne.s32.totalorder %s110, %s111
      %p120 = scmp.eq.s32.totalorder %s15, 0
      %p121 = por %p119, %p120
      %p122 = scmp.ne.s32.totalorder %s110, %s111
      %p123 = scmp.eq.s32.totalorder %s16, 7
      %p124 = por %p122, %p123
      %p126 = scmp.ne.s32.totalorder %s111, %s125
      %p127 = scmp.eq.s32.totalorder %s16, 0
      %p128 = por %p126, %p127
      %s129 = ssub.s32 %s17, %s29
      %p130 = scmp.eq.s32.totalorder %s129, 0
      %s132 = sadd.s32 %s131, 1
      %s133 = scalar_select %p130, %s131, %s132
      %p136 = pneg %p130
      %p137 = scmp.eq.s32.totalorder %s10, 7
      %p138 = por %p136, %p137
      %p139 = scmp.ne.s32.totalorder %s131, %s134
      %p140 = scmp.eq.s32.totalorder %s10, 0
      %p141 = por %p139, %p140
      %p142 = scmp.ne.s32.totalorder %s131, %s134
      %p143 = scmp.eq.s32.totalorder %s15, 7
      %p144 = por %p142, %p143
      %p145 = scmp.ne.s32.totalorder %s134, %s135
      %p146 = scmp.eq.s32.totalorder %s15, 0
      %p147 = por %p145, %p146
      %p148 = scmp.ne.s32.totalorder %s134, %s135
      %p149 = scmp.eq.s32.totalorder %s16, 7
      %p150 = por %p148, %p149
      %p152 = scmp.ne.s32.totalorder %s135, %s151
      %p153 = scmp.eq.s32.totalorder %s16, 0
      %p154 = por %p152, %p153
      %p155 = scmp.le.s32.totalorder 1, %s10
      %p156 = scmp.lt.s32.totalorder %s10, 9
      %p157 = pnand %p155, %p156
      %p158 = pneg %p157
      // Predicated region
      $region9: #{tpu_custom_call.1} parent=5 // pred_check
        _
      $region10: #{tpu_custom_call.1} parent=5 // pred_check_branch
        %160 = sbr.rel (%p157) target = $region12
      $region11: #{tpu_custom_call.1} parent=5 // pred_region
        %s161 = ssub.s32 %s10, 1
        // Predicated region
        $region13: #{tpu_custom_call.1} parent=11 // pred_check
          %p162 = pneg %p121
        $region14: #{tpu_custom_call.1} parent=11 // pred_check_branch
          %164 = sbr.rel (%p162) target = $region16
        $region15: #{tpu_custom_call.1} parent=11 // pred_region
          _
        $region16: #{tpu_custom_call.1} parent=11 // pred_fallthru
          _
      $region12: #{tpu_custom_call.1} parent=5 // pred_fallthru
        _
      %p165 = scmp.lt.s32.totalorder %s10, 8
      // Predicated region
      $region17: #{tpu_custom_call.1} parent=5 // pred_check
        %p166 = pneg %p165
      $region18: #{tpu_custom_call.1} parent=5 // pred_check_branch
        %168 = sbr.rel (%p166) target = $region20
      $region19: #{tpu_custom_call.1} parent=5 // pred_region
        // Predicated region
        $region21: #{tpu_custom_call.1} parent=19 // pred_check
          %p169 = pneg %p42
        $region22: #{tpu_custom_call.1} parent=19 // pred_check_branch
          %171 = sbr.rel (%p169) target = $region24
        $region23: #{tpu_custom_call.1} parent=19 // pred_region
          %p172 = scmp.lt.s32.totalorder %s17, 1
          %s173 = scalar_select %p172, %s17, 1
          %s174 = smul.addr %s173, 16
          %s175 = smul.addr %s174, 8
          %s176 = scalar_lea.vmem %s0, %s175
        $region24: #{tpu_custom_call.1} parent=19 // pred_fallthru
          _
        // Predicated region
        $region25: #{tpu_custom_call.1} parent=19 // pred_check
          %p177 = pneg %p68
        $region26: #{tpu_custom_call.1} parent=19 // pred_check_branch
          %179 = sbr.rel (%p177) target = $region28
        $region27: #{tpu_custom_call.1} parent=19 // pred_region
          %s180 = sand.u32 %s58, 1
          %s181 = sand.u32 %s58, 1
          %s182 = smul.addr %s181, 96
          %s183 = scalar_lea.vmem [#allocation3], %s182
          %s184 = smul.addr %s18, 4
          %s185 = smul.addr %s184, 8
          %s186 = scalar_lea.vmem %s1, %s185
          // Predicated region
          $region29: #{tpu_custom_call.1} parent=27 // pred_check
            _
          $region30: #{tpu_custom_call.1} parent=27 // pred_check_branch
            %188 = sbr.rel (0) target = $region32
          $region31: #{tpu_custom_call.1} parent=27 // pred_region
            // Predicated region
            $region33: #{tpu_custom_call.1} parent=31 // pred_check
              _
            $region34: #{tpu_custom_call.1} parent=31 // pred_check_branch
              %190 = sbr.rel (0) target = $region36
            $region35: #{tpu_custom_call.1} parent=31 // pred_region
              // Predicated region
              $region48: #{tpu_custom_call.1} parent=35 // pred_check
                _
              $region49: #{tpu_custom_call.1} parent=35 // pred_check_branch
                %228 = sbr.rel (0) target = $region51
              $region50: #{tpu_custom_call.1} parent=35 // pred_region
                loop: start=0, step=1, limit=1
                $region52: #{tpu_custom_call.1} parent=50 // loop_pre_header
                  _
                $region53: #{tpu_custom_call.1} parent=50 // loop_header
                  %s230 = sphi 0, %s234
                  %p231 = scmp.ge.s32.totalorder %s230, 1
                  %s235 = sphi %s186, %s186
                  %s236 = sphi %s183, %s183
                $region54: #{tpu_custom_call.1} parent=50 // loop_header_branch
                  %233 = sbr.rel (%p231) target = $region58
                $region55: #{tpu_custom_call.1} parent=50 // loop_body
                  %v237 = vld [vmem:[%s235] sm:$0xff]
                  %238 = vst [vmem:[%s236] sm:$0xff] %v237
                  %v239 = vld [vmem:[%s235 + $0x8] sm:$0xff]
                  %240 = vst [vmem:[%s236 + $0x8] sm:$0xff] %v239
                  %v241 = vld [vmem:[%s235 + $0x10] sm:$0xff]
                  %242 = vst [vmem:[%s236 + $0x10] sm:$0xff] %v241
                  %v243 = vld [vmem:[%s235 + $0x18] sm:$0xff]
                  %244 = vst [vmem:[%s236 + $0x18] sm:$0xff] %v243
                  %v245 = vld [vmem:[%s235 + $0x80] sm:$0xff]
                  %246 = vst [vmem:[%s236 + $0x20] sm:$0xff] %v245
                  %v247 = vld [vmem:[%s235 + $0x88] sm:$0xff]
                  %248 = vst [vmem:[%s236 + $0x28] sm:$0xff] %v247
                  %v249 = vld [vmem:[%s235 + $0x90] sm:$0xff]
                  %250 = vst [vmem:[%s236 + $0x30] sm:$0xff] %v249
                  %v251 = vld [vmem:[%s235 + $0x98] sm:$0xff]
                  %252 = vst [vmem:[%s236 + $0x38] sm:$0xff] %v251
                  %v253 = vld [vmem:[%s235 + $0x100] sm:$0xff]
                  %254 = vst [vmem:[%s236 + $0x40] sm:$0xff] %v253
                  %v255 = vld [vmem:[%s235 + $0x108] sm:$0xff]
                  %256 = vst [vmem:[%s236 + $0x48] sm:$0xff] %v255
                  %v257 = vld [vmem:[%s235 + $0x110] sm:$0xff]
                  %258 = vst [vmem:[%s236 + $0x50] sm:$0xff] %v257
                  %v259 = vld [vmem:[%s235 + $0x118] sm:$0xff]
                  %260 = vst [vmem:[%s236 + $0x58] sm:$0xff] %v259
                $region56: #{tpu_custom_call.1} parent=50 // loop_footer
                  %s234 = sadd.s32 1, %s230
                $region57: #{tpu_custom_call.1} parent=50 // loop_footer_branch
                  %229 = sbr.rel target = $region53
                $region58: #{tpu_custom_call.1} parent=50 // loop_exit
                  _
              $region51: #{tpu_custom_call.1} parent=35 // pred_fallthru
                _
              // Predicated region
              $region59: #{tpu_custom_call.1} parent=35 // pred_check
                _
              $region60: #{tpu_custom_call.1} parent=35 // pred_check_branch
                %262 = sbr.rel target = $region62
              $region61: #{tpu_custom_call.1} parent=35 // pred_region
                _
              $region62: #{tpu_custom_call.1} parent=35 // pred_fallthru
                _
            $region36: #{tpu_custom_call.1} parent=31 // pred_fallthru
              _
            // Predicated region
            $region37: #{tpu_custom_call.1} parent=31 // pred_check
              _
            $region38: #{tpu_custom_call.1} parent=31 // pred_check_branch
              %192 = sbr.rel target = $region40
            $region39: #{tpu_custom_call.1} parent=31 // pred_region
              %s194 = ssub.s32 256, 1
              loop: start=0, step=1, limit=1
              $region41: #{tpu_custom_call.1} parent=39 // loop_pre_header
                _
              $region42: #{tpu_custom_call.1} parent=39 // loop_header
                %s196 = sphi 0, %s200
                %p197 = scmp.ge.s32.totalorder %s196, 1
                %s201 = sphi %s186, %s186
                %s202 = sphi %s183, %s183
              $region43: #{tpu_custom_call.1} parent=39 // loop_header_branch
                %199 = sbr.rel (%p197) target = $region47
              $region44: #{tpu_custom_call.1} parent=39 // loop_body
                %v203 = vld [vmem:[%s201] sm:%s194]
                %204 = vst [vmem:[%s202] sm:%s194] %v203
                %v205 = vld [vmem:[%s201 + $0x8] sm:%s194]
                %206 = vst [vmem:[%s202 + $0x8] sm:%s194] %v205
                %v207 = vld [vmem:[%s201 + $0x10] sm:%s194]
                %208 = vst [vmem:[%s202 + $0x10] sm:%s194] %v207
                %v209 = vld [vmem:[%s201 + $0x18] sm:%s194]
                %210 = vst [vmem:[%s202 + $0x18] sm:%s194] %v209
                %v211 = vld [vmem:[%s201 + $0x80] sm:%s194]
                %212 = vst [vmem:[%s202 + $0x20] sm:%s194] %v211
                %v213 = vld [vmem:[%s201 + $0x88] sm:%s194]
                %214 = vst [vmem:[%s202 + $0x28] sm:%s194] %v213
                %v215 = vld [vmem:[%s201 + $0x90] sm:%s194]
                %216 = vst [vmem:[%s202 + $0x30] sm:%s194] %v215
                %v217 = vld [vmem:[%s201 + $0x98] sm:%s194]
                %218 = vst [vmem:[%s202 + $0x38] sm:%s194] %v217
                %v219 = vld [vmem:[%s201 + $0x100] sm:%s194]
                %220 = vst [vmem:[%s202 + $0x40] sm:%s194] %v219
                %v221 = vld [vmem:[%s201 + $0x108] sm:%s194]
                %222 = vst [vmem:[%s202 + $0x48] sm:%s194] %v221
                %v223 = vld [vmem:[%s201 + $0x110] sm:%s194]
                %224 = vst [vmem:[%s202 + $0x50] sm:%s194] %v223
                %v225 = vld [vmem:[%s201 + $0x118] sm:%s194]
                %226 = vst [vmem:[%s202 + $0x58] sm:%s194] %v225
              $region45: #{tpu_custom_call.1} parent=39 // loop_footer
                %s200 = sadd.s32 1, %s196
              $region46: #{tpu_custom_call.1} parent=39 // loop_footer_branch
                %195 = sbr.rel target = $region42
              $region47: #{tpu_custom_call.1} parent=39 // loop_exit
                _
            $region40: #{tpu_custom_call.1} parent=31 // pred_fallthru
              _
          $region32: #{tpu_custom_call.1} parent=27 // pred_fallthru
            _
          %263 = vnop
        $region28: #{tpu_custom_call.1} parent=19 // pred_fallthru
          _
        // Predicated region
        $region63: #{tpu_custom_call.1} parent=19 // pred_check
          %p264 = pneg %p94
        $region64: #{tpu_custom_call.1} parent=19 // pred_check_branch
          %266 = sbr.rel (%p264) target = $region66
        $region65: #{tpu_custom_call.1} parent=19 // pred_region
          %p267 = scmp.lt.s32.totalorder %s18, 3
          %s268 = scalar_select %p267, %s18, 3
          %s269 = smul.addr %s268, 8
          %s270 = scalar_lea.vmem %s2, %s269
        $region66: #{tpu_custom_call.1} parent=19 // pred_fallthru
          _
      $region20: #{tpu_custom_call.1} parent=5 // pred_fallthru
        _
      %p271 = scmp.le.s32.totalorder 1, %s10
      %p272 = scmp.lt.s32.totalorder %s10, 9
      %p273 = pnand %p271, %p272
      %p274 = pneg %p273
      // Predicated region
      $region67: #{tpu_custom_call.1} parent=5 // pred_check
        _
      $region68: #{tpu_custom_call.1} parent=5 // pred_check_branch
        %276 = sbr.rel (%p273) target = $region70
      $region69: #{tpu_custom_call.1} parent=5 // pred_region
        %s277 = ssub.s32 %s10, 1
        %s278 = sand.u32 %s61, 1
        %s279 = sand.u32 %s61, 1
        %s280 = smul.addr %s279, 96
        %s281 = scalar_lea.vmem [#allocation3], %s280
        // Predicated region
        $region71: #{tpu_custom_call.1} parent=69 // pred_check
          %p282 = pneg %p74
        $region72: #{tpu_custom_call.1} parent=69 // pred_check_branch
          %284 = sbr.rel (%p282) target = $region74
        $region73: #{tpu_custom_call.1} parent=69 // pred_region
          _
        $region74: #{tpu_custom_call.1} parent=69 // pred_fallthru
          _
        %p285 = scmp.lt.s32.totalorder %s19, 1
        %s286 = scalar_select %p285, %s19, 1
        %s287 = smul.addr %s286, 16
        %s288 = smul.addr %s287, 8
        %s289 = scalar_lea.vmem %s0, %s288
        %p290 = pneg %p48
        %p291 = pneg %p45
        %s292 = sand.u32 %s61, 1
        %s293 = sand.u32 %s61, 1
        %s294 = smul.addr %s293, 96
        %s295 = scalar_lea.vmem [#allocation3], %s294
        %p296 = pneg %p74
        %p297 = pneg %p71
        %p298 = scmp.lt.s32.totalorder %s20, 3
        %s299 = scalar_select %p298, %s20, 3
        %s300 = smul.addr %s299, 8
        %s301 = scalar_lea.vmem %s2, %s300
        %p302 = pneg %p100
        %p303 = pneg %p97
        %p304 = pneg %p121
        %p305 = pneg %p118
        %p306 = pneg %p147
        %p307 = pneg %p144
        %p308 = scmp.lt.s32.totalorder %s19, 1
        %s309 = scalar_select %p308, %s19, 1
        %s310 = smul.addr %s309, 16
        %s311 = smul.addr %s310, 8
        %s312 = scalar_lea.vmem %s4, %s311
        %p313 = scmp.lt.s32.totalorder %s19, 1
        %s314 = scalar_select %p313, %s19, 1
        %s315 = smul.addr %s314, 16
        %s316 = smul.addr %s315, 8
        %s317 = scalar_lea.vmem %s0, %s316
        %p318 = scmp.lt.s32.totalorder %s20, 3
        %s319 = scalar_select %p318, %s20, 3
        %s320 = smul.addr %s319, 8
        %s321 = scalar_lea.vmem %s2, %s320
        %p322 = scmp.lt.s32.totalorder %s19, 1
        %s323 = scalar_select %p322, %s19, 1
        %s324 = smul.addr %s323, 16
        %s325 = smul.addr %s324, 8
        %s326 = scalar_lea.vmem %s4, %s325
        %p327 = scmp.eq.s32.totalorder %s20, 0
        // Predicated region
        $region75: #{tpu_custom_call.1} parent=69 // pred_check
          %p328 = pneg %p327
        $region76: #{tpu_custom_call.1} parent=69 // pred_check_branch
          %330 = sbr.rel (%p328) target = $region78
        $region77: #{tpu_custom_call.1} parent=69 // pred_region
          %vm331 = vcmask 261120
          %332 = vst.msk [vmem:[#allocation2] sm:$0xff] %vm331, 0.0
          %333 = vst.msk [vmem:[#allocation2 + $0x8] sm:$0xff] %vm331, 0.0
          %334 = vst.msk [vmem:[#allocation2 + $0x10] sm:$0xff] %vm331, 0.0
          %335 = vst.msk [vmem:[#allocation2 + $0x18] sm:$0xff] %vm331, 0.0
          %336 = vst.msk [vmem:[#allocation2 + $0x20] sm:$0xff] %vm331, 0.0
          %337 = vst.msk [vmem:[#allocation2 + $0x28] sm:$0xff] %vm331, 0.0
          %338 = vst.msk [vmem:[#allocation2 + $0x30] sm:$0xff] %vm331, 0.0
          %339 = vst.msk [vmem:[#allocation2 + $0x38] sm:$0xff] %vm331, 0.0
          %340 = vst.msk [vmem:[#allocation2 + $0x40] sm:$0xff] %vm331, 0.0
          %341 = vst.msk [vmem:[#allocation2 + $0x48] sm:$0xff] %vm331, 0.0
          %342 = vst.msk [vmem:[#allocation2 + $0x50] sm:$0xff] %vm331, 0.0
          %343 = vst.msk [vmem:[#allocation2 + $0x58] sm:$0xff] %vm331, 0.0
          %344 = vst.msk [vmem:[#allocation2 + $0x60] sm:$0xff] %vm331, 0.0
          %345 = vst.msk [vmem:[#allocation2 + $0x68] sm:$0xff] %vm331, 0.0
          %346 = vst.msk [vmem:[#allocation2 + $0x70] sm:$0xff] %vm331, 0.0
          %347 = vst.msk [vmem:[#allocation2 + $0x78] sm:$0xff] %vm331, 0.0
        $region78: #{tpu_custom_call.1} parent=69 // pred_fallthru
          _
        %v348 = vld [vmem:[%s317] sm:$0xff]
        %v349 = vld [vmem:[%s317 + $0x8] sm:$0xff]
        %v350 = vld [vmem:[%s317 + $0x10] sm:$0xff]
        %v351 = vld [vmem:[%s317 + $0x18] sm:$0xff]
        %v352 = vld [vmem:[%s317 + $0x20] sm:$0xff]
        %v353 = vld [vmem:[%s317 + $0x28] sm:$0xff]
        %v354 = vld [vmem:[%s317 + $0x30] sm:$0xff]
        %v355 = vld [vmem:[%s317 + $0x38] sm:$0xff]
        %v356 = vld [vmem:[%s317 + $0x40] sm:$0xff]
        %v357 = vld [vmem:[%s317 + $0x48] sm:$0xff]
        %v358 = vld [vmem:[%s317 + $0x50] sm:$0xff]
        %v359 = vld [vmem:[%s317 + $0x58] sm:$0xff]
        %v360 = vld [vmem:[%s317 + $0x60] sm:$0xff]
        %v361 = vld [vmem:[%s317 + $0x68] sm:$0xff]
        %v362 = vld [vmem:[%s317 + $0x70] sm:$0xff]
        %v363 = vld [vmem:[%s317 + $0x78] sm:$0xff]
        %v364 = vld [vmem:[%s281] sm:$0xff]
        %v365 = vld [vmem:[%s281 + $0x8] sm:$0xff]
        %v366 = vld [vmem:[%s281 + $0x10] sm:$0xff]
        %v367 = vld [vmem:[%s281 + $0x18] sm:$0xff]
        %vm368 = vcmask 261120
        %v370 = vsel %vm368, %v348, 0
        %v373 = vsel %vm368, %v349, 0
        %v376 = vsel %vm368, %v350, 0
        %v379 = vsel %vm368, %v351, 0
        %v382 = vsel %vm368, %v352, 0
        %v385 = vsel %vm368, %v353, 0
        %v388 = vsel %vm368, %v354, 0
        %v391 = vsel %vm368, %v355, 0
        %v394 = vsel %vm368, %v356, 0
        %v397 = vsel %vm368, %v357, 0
        %v400 = vsel %vm368, %v358, 0
        %v403 = vsel %vm368, %v359, 0
        %v406 = vsel %vm368, %v360, 0
        %v409 = vsel %vm368, %v361, 0
        %v412 = vsel %vm368, %v362, 0
        %v415 = vsel %vm368, %v363, 0
        %417 = vmatpush.msra.mxu0 0.0
        %418 = vmatpush.msra.mxu0 0.0
        %419 = vmatpush.msra.mxu0 0.0
        %420 = vmatpush.msra.mxu0 0.0
        %421 = vmatpush.msra.mxu0 0.0
        %422 = vmatpush.msra.mxu0 0.0
        %423 = vmatpush.msra.mxu0 0.0
        %424 = vmatpush.msra.mxu0 0.0
        %425 = vmatpush.msra.mxu0 0.0
        %426 = vmatpush.msra.mxu0 0.0
        %427 = vmatpush.msra.mxu0 0.0
        %428 = vmatpush.msra.mxu0 0.0
        %429 = vmatpush.msra.mxu0 %v367
        %430 = vmatpush.msra.mxu0 %v366
        %431 = vmatpush.msra.mxu0 %v365
        %432 = vmatpush.msra.mxu0 %v364
        %433 = vmatmul.f32.gmra.mxu0 %v370
        %v434 = vpop.f32.mrf.mxu0
        %v435 = vadd.f32 0.0, %v434
        %436 = vmatmul.f32.gmra.mxu0 %v373
        %v437 = vpop.f32.mrf.mxu0
        %v438 = vadd.f32 0.0, %v437
        %439 = vmatmul.f32.gmra.mxu0 %v376
        %v440 = vpop.f32.mrf.mxu0
        %v441 = vadd.f32 0.0, %v440
        %442 = vmatmul.f32.gmra.mxu0 %v379
        %v443 = vpop.f32.mrf.mxu0
        %v444 = vadd.f32 0.0, %v443
        %445 = vmatmul.f32.gmra.mxu0 %v382
        %v446 = vpop.f32.mrf.mxu0
        %v447 = vadd.f32 0.0, %v446
        %448 = vmatmul.f32.gmra.mxu0 %v385
        %v449 = vpop.f32.mrf.mxu0
        %v450 = vadd.f32 0.0, %v449
        %451 = vmatmul.f32.gmra.mxu0 %v388
        %v452 = vpop.f32.mrf.mxu0
        %v453 = vadd.f32 0.0, %v452
        %454 = vmatmul.f32.gmra.mxu0 %v391
        %v455 = vpop.f32.mrf.mxu0
        %v456 = vadd.f32 0.0, %v455
        %457 = vmatmul.f32.gmra.mxu0 %v394
        %v458 = vpop.f32.mrf.mxu0
        %v459 = vadd.f32 0.0, %v458
        %460 = vmatmul.f32.gmra.mxu0 %v397
        %v461 = vpop.f32.mrf.mxu0
        %v462 = vadd.f32 0.0, %v461
        %463 = vmatmul.f32.gmra.mxu0 %v400
        %v464 = vpop.f32.mrf.mxu0
        %v465 = vadd.f32 0.0, %v464
        %466 = vmatmul.f32.gmra.mxu0 %v403
        %v467 = vpop.f32.mrf.mxu0
        %v468 = vadd.f32 0.0, %v467
        %469 = vmatmul.f32.gmra.mxu0 %v406
        %v470 = vpop.f32.mrf.mxu0
        %v471 = vadd.f32 0.0, %v470
        %472 = vmatmul.f32.gmra.mxu0 %v409
        %v473 = vpop.f32.mrf.mxu0
        %v474 = vadd.f32 0.0, %v473
        %475 = vmatmul.f32.gmra.mxu0 %v412
        %v476 = vpop.f32.mrf.mxu0
        %v477 = vadd.f32 0.0, %v476
        %478 = vmatmul.f32.gmra.mxu0 %v415
        %v479 = vpop.f32.mrf.mxu0
        %v480 = vadd.f32 0.0, %v479
        %481 = vdwg.mxu0
        %s482 = scalar_lea.vmem %s281, 32 [#allocation3]
        %v483 = vld [vmem:[%s482] sm:$0xff]
        %v484 = vld [vmem:[%s482 + $0x8] sm:$0xff]
        %v485 = vld [vmem:[%s482 + $0x10] sm:$0xff]
        %v486 = vld [vmem:[%s482 + $0x18] sm:$0xff]
        %487 = vmatpush.msra.mxu0 0.0
        %488 = vmatpush.msra.mxu0 0.0
        %489 = vmatpush.msra.mxu0 0.0
        %490 = vmatpush.msra.mxu0 0.0
        %491 = vmatpush.msra.mxu0 0.0
        %492 = vmatpush.msra.mxu0 0.0
        %493 = vmatpush.msra.mxu0 0.0
        %494 = vmatpush.msra.mxu0 0.0
        %495 = vmatpush.msra.mxu0 0.0
        %496 = vmatpush.msra.mxu0 0.0
        %497 = vmatpush.msra.mxu0 0.0
        %498 = vmatpush.msra.mxu0 0.0
        %499 = vmatpush.msra.mxu0 %v486
        %500 = vmatpush.msra.mxu0 %v485
        %501 = vmatpush.msra.mxu0 %v484
        %502 = vmatpush.msra.mxu0 %v483
        %503 = vmatmul.f32.gmra.mxu0 %v370
        %v504 = vpop.f32.mrf.mxu0
        %v505 = vadd.f32 0.0, %v504
        %506 = vmatmul.f32.gmra.mxu0 %v373
        %v507 = vpop.f32.mrf.mxu0
        %v508 = vadd.f32 0.0, %v507
        %509 = vmatmul.f32.gmra.mxu0 %v376
        %v510 = vpop.f32.mrf.mxu0
        %v511 = vadd.f32 0.0, %v510
        %512 = vmatmul.f32.gmra.mxu0 %v379
        %v513 = vpop.f32.mrf.mxu0
        %v514 = vadd.f32 0.0, %v513
        %515 = vmatmul.f32.gmra.mxu0 %v382
        %v516 = vpop.f32.mrf.mxu0
        %v517 = vadd.f32 0.0, %v516
        %518 = vmatmul.f32.gmra.mxu0 %v385
        %v519 = vpop.f32.mrf.mxu0
        %v520 = vadd.f32 0.0, %v519
        %521 = vmatmul.f32.gmra.mxu0 %v388
        %v522 = vpop.f32.mrf.mxu0
        %v523 = vadd.f32 0.0, %v522
        %524 = vmatmul.f32.gmra.mxu0 %v391
        %v525 = vpop.f32.mrf.mxu0
        %v526 = vadd.f32 0.0, %v525
        %527 = vmatmul.f32.gmra.mxu0 %v394
        %v528 = vpop.f32.mrf.mxu0
        %v529 = vadd.f32 0.0, %v528
        %530 = vmatmul.f32.gmra.mxu0 %v397
        %v531 = vpop.f32.mrf.mxu0
        %v532 = vadd.f32 0.0, %v531
        %533 = vmatmul.f32.gmra.mxu0 %v400
        %v534 = vpop.f32.mrf.mxu0
        %v535 = vadd.f32 0.0, %v534
        %536 = vmatmul.f32.gmra.mxu0 %v403
        %v537 = vpop.f32.mrf.mxu0
        %v538 = vadd.f32 0.0, %v537
        %539 = vmatmul.f32.gmra.mxu0 %v406
        %v540 = vpop.f32.mrf.mxu0
        %v541 = vadd.f32 0.0, %v540
        %542 = vmatmul.f32.gmra.mxu0 %v409
        %v543 = vpop.f32.mrf.mxu0
        %v544 = vadd.f32 0.0, %v543
        %545 = vmatmul.f32.gmra.mxu0 %v412
        %v546 = vpop.f32.mrf.mxu0
        %v547 = vadd.f32 0.0, %v546
        %548 = vmatmul.f32.gmra.mxu0 %v415
        %v549 = vpop.f32.mrf.mxu0
        %v550 = vadd.f32 0.0, %v549
        %551 = vdwg.mxu0
        %s552 = scalar_lea.vmem %s281, 64 [#allocation3]
        %v553 = vld [vmem:[%s552] sm:$0xff]
        %v554 = vld [vmem:[%s552 + $0x8] sm:$0xff]
        %v555 = vld [vmem:[%s552 + $0x10] sm:$0xff]
        %v556 = vld [vmem:[%s552 + $0x18] sm:$0xff]
        %557 = vmatpush.msra.mxu0 0.0
        %558 = vmatpush.msra.mxu0 0.0
        %559 = vmatpush.msra.mxu0 0.0
        %560 = vmatpush.msra.mxu0 0.0
        %561 = vmatpush.msra.mxu0 0.0
        %562 = vmatpush.msra.mxu0 0.0
        %563 = vmatpush.msra.mxu0 0.0
        %564 = vmatpush.msra.mxu0 0.0
        %565 = vmatpush.msra.mxu0 0.0
        %566 = vmatpush.msra.mxu0 0.0
        %567 = vmatpush.msra.mxu0 0.0
        %568 = vmatpush.msra.mxu0 0.0
        %569 = vmatpush.msra.mxu0 %v556
        %570 = vmatpush.msra.mxu0 %v555
        %571 = vmatpush.msra.mxu0 %v554
        %572 = vmatpush.msra.mxu0 %v553
        %573 = vmatmul.f32.gmra.mxu0 %v370
        %v574 = vpop.f32.mrf.mxu0
        %v575 = vadd.f32 0.0, %v574
        %576 = vmatmul.f32.gmra.mxu0 %v373
        %v577 = vpop.f32.mrf.mxu0
        %v578 = vadd.f32 0.0, %v577
        %579 = vmatmul.f32.gmra.mxu0 %v376
        %v580 = vpop.f32.mrf.mxu0
        %v581 = vadd.f32 0.0, %v580
        %582 = vmatmul.f32.gmra.mxu0 %v379
        %v583 = vpop.f32.mrf.mxu0
        %v584 = vadd.f32 0.0, %v583
        %585 = vmatmul.f32.gmra.mxu0 %v382
        %v586 = vpop.f32.mrf.mxu0
        %v587 = vadd.f32 0.0, %v586
        %588 = vmatmul.f32.gmra.mxu0 %v385
        %v589 = vpop.f32.mrf.mxu0
        %v590 = vadd.f32 0.0, %v589
        %591 = vmatmul.f32.gmra.mxu0 %v388
        %v592 = vpop.f32.mrf.mxu0
        %v593 = vadd.f32 0.0, %v592
        %594 = vmatmul.f32.gmra.mxu0 %v391
        %v595 = vpop.f32.mrf.mxu0
        %v596 = vadd.f32 0.0, %v595
        %597 = vmatmul.f32.gmra.mxu0 %v394
        %v598 = vpop.f32.mrf.mxu0
        %v599 = vadd.f32 0.0, %v598
        %600 = vmatmul.f32.gmra.mxu0 %v397
        %v601 = vpop.f32.mrf.mxu0
        %v602 = vadd.f32 0.0, %v601
        %603 = vmatmul.f32.gmra.mxu0 %v400
        %v604 = vpop.f32.mrf.mxu0
        %v605 = vadd.f32 0.0, %v604
        %606 = vmatmul.f32.gmra.mxu0 %v403
        %v607 = vpop.f32.mrf.mxu0
        %v608 = vadd.f32 0.0, %v607
        %609 = vmatmul.f32.gmra.mxu0 %v406
        %v610 = vpop.f32.mrf.mxu0
        %v611 = vadd.f32 0.0, %v610
        %612 = vmatmul.f32.gmra.mxu0 %v409
        %v613 = vpop.f32.mrf.mxu0
        %v614 = vadd.f32 0.0, %v613
        %615 = vmatmul.f32.gmra.mxu0 %v412
        %v616 = vpop.f32.mrf.mxu0
        %v617 = vadd.f32 0.0, %v616
        %618 = vmatmul.f32.gmra.mxu0 %v415
        %v619 = vpop.f32.mrf.mxu0
        %v620 = vadd.f32 0.0, %v619
        %621 = vdwg.mxu0
        %vm622 = vcmask 64512
        %v624 = vsel %vm622, %v435, 0
        %v627 = vsel %vm622, %v438, 0
        %v630 = vsel %vm622, %v441, 0
        %v633 = vsel %vm622, %v444, 0
        %v636 = vsel %vm622, %v447, 0
        %v639 = vsel %vm622, %v450, 0
        %v642 = vsel %vm622, %v453, 0
        %v645 = vsel %vm622, %v456, 0
        %v648 = vsel %vm622, %v459, 0
        %v651 = vsel %vm622, %v462, 0
        %v654 = vsel %vm622, %v465, 0
        %v657 = vsel %vm622, %v468, 0
        %v660 = vsel %vm622, %v471, 0
        %v663 = vsel %vm622, %v474, 0
        %v666 = vsel %vm622, %v477, 0
        %v669 = vsel %vm622, %v480, 0
        %v672 = vsel %vm622, %v505, 0
        %v675 = vsel %vm622, %v508, 0
        %v678 = vsel %vm622, %v511, 0
        %v681 = vsel %vm622, %v514, 0
        %v684 = vsel %vm622, %v517, 0
        %v687 = vsel %vm622, %v520, 0
        %v690 = vsel %vm622, %v523, 0
        %v693 = vsel %vm622, %v526, 0
        %v696 = vsel %vm622, %v529, 0
        %v699 = vsel %vm622, %v532, 0
        %v702 = vsel %vm622, %v535, 0
        %v705 = vsel %vm622, %v538, 0
        %v708 = vsel %vm622, %v541, 0
        %v711 = vsel %vm622, %v544, 0
        %v714 = vsel %vm622, %v547, 0
        %v717 = vsel %vm622, %v550, 0
        %719 = vmatpush.xpose.msra.mxu0 %v717
        %720 = vmatpush.xpose.msra.mxu0 %v714
        %721 = vmatpush.xpose.msra.mxu0 %v711
        %722 = vmatpush.xpose.msra.mxu0 %v708
        %723 = vmatpush.xpose.msra.mxu0 %v705
        %724 = vmatpush.xpose.msra.mxu0 %v702
        %725 = vmatpush.xpose.msra.mxu0 %v699
        %726 = vmatpush.xpose.msra.mxu0 %v696
        %727 = vmatpush.xpose.msra.mxu0 %v693
        %728 = vmatpush.xpose.msra.mxu0 %v690
        %729 = vmatpush.xpose.msra.mxu0 %v687
        %730 = vmatpush.xpose.msra.mxu0 %v684
        %731 = vmatpush.xpose.msra.mxu0 %v681
        %732 = vmatpush.xpose.msra.mxu0 %v678
        %733 = vmatpush.xpose.msra.mxu0 %v675
        %734 = vmatpush.xpose.msra.mxu0 %v672
        %735 = vmatmul.f32.gmra.mxu0 %v624
        %v736 = vpop.f32.mrf.mxu0
        %v737 = vadd.f32 0.0, %v736
        %738 = vmatmul.f32.gmra.mxu0 %v627
        %v739 = vpop.f32.mrf.mxu0
        %v740 = vadd.f32 0.0, %v739
        %741 = vmatmul.f32.gmra.mxu0 %v630
        %v742 = vpop.f32.mrf.mxu0
        %v743 = vadd.f32 0.0, %v742
        %744 = vmatmul.f32.gmra.mxu0 %v633
        %v745 = vpop.f32.mrf.mxu0
        %v746 = vadd.f32 0.0, %v745
        %747 = vmatmul.f32.gmra.mxu0 %v636
        %v748 = vpop.f32.mrf.mxu0
        %v749 = vadd.f32 0.0, %v748
        %750 = vmatmul.f32.gmra.mxu0 %v639
        %v751 = vpop.f32.mrf.mxu0
        %v752 = vadd.f32 0.0, %v751
        %753 = vmatmul.f32.gmra.mxu0 %v642
        %v754 = vpop.f32.mrf.mxu0
        %v755 = vadd.f32 0.0, %v754
        %756 = vmatmul.f32.gmra.mxu0 %v645
        %v757 = vpop.f32.mrf.mxu0
        %v758 = vadd.f32 0.0, %v757
        %759 = vmatmul.f32.gmra.mxu0 %v648
        %v760 = vpop.f32.mrf.mxu0
        %v761 = vadd.f32 0.0, %v760
        %762 = vmatmul.f32.gmra.mxu0 %v651
        %v763 = vpop.f32.mrf.mxu0
        %v764 = vadd.f32 0.0, %v763
        %765 = vmatmul.f32.gmra.mxu0 %v654
        %v766 = vpop.f32.mrf.mxu0
        %v767 = vadd.f32 0.0, %v766
        %768 = vmatmul.f32.gmra.mxu0 %v657
        %v769 = vpop.f32.mrf.mxu0
        %v770 = vadd.f32 0.0, %v769
        %771 = vmatmul.f32.gmra.mxu0 %v660
        %v772 = vpop.f32.mrf.mxu0
        %v773 = vadd.f32 0.0, %v772
        %774 = vmatmul.f32.gmra.mxu0 %v663
        %v775 = vpop.f32.mrf.mxu0
        %v776 = vadd.f32 0.0, %v775
        %777 = vmatmul.f32.gmra.mxu0 %v666
        %v778 = vpop.f32.mrf.mxu0
        %v779 = vadd.f32 0.0, %v778
        %780 = vmatmul.f32.gmra.mxu0 %v669
        %v781 = vpop.f32.mrf.mxu0
        %v782 = vadd.f32 0.0, %v781
        %783 = vdwg.mxu0
        %v784 = vlaneseq
        %v785 = vand.u32 %v784, 127
        %vm786 = vcmp.lt.s32.totalorder %v785, 8
        %v787 = vsel %vm786, %v737, -1e+30
        %v788 = vsel %vm786, %v740, -1e+30
        %v789 = vsel %vm786, %v743, -1e+30
        %v790 = vsel %vm786, %v746, -1e+30
        %v791 = vsel %vm786, %v749, -1e+30
        %v792 = vsel %vm786, %v752, -1e+30
        %v793 = vsel %vm786, %v755, -1e+30
        %v794 = vsel %vm786, %v758, -1e+30
        %v795 = vsel %vm786, %v761, -1e+30
        %v796 = vsel %vm786, %v764, -1e+30
        %v797 = vsel %vm786, %v767, -1e+30
        %v798 = vsel %vm786, %v770, -1e+30
        %v799 = vsel %vm786, %v773, -1e+30
        %v800 = vsel %vm786, %v776, -1e+30
        %v801 = vsel %vm786, %v779, -1e+30
        %v802 = vsel %vm786, %v782, -1e+30
        %803 = vmax.xlane.f32.xlu0 %v787
        %v804 = vpop.xlane.xlu0 %803
        %805 = vmax.xlane.f32.xlu0 %v788
        %v806 = vpop.xlane.xlu0 %805
        %807 = vmax.xlane.f32.xlu0 %v789
        %v808 = vpop.xlane.xlu0 %807
        %809 = vmax.xlane.f32.xlu0 %v790
        %v810 = vpop.xlane.xlu0 %809
        %811 = vmax.xlane.f32.xlu0 %v791
        %v812 = vpop.xlane.xlu0 %811
        %813 = vmax.xlane.f32.xlu0 %v792
        %v814 = vpop.xlane.xlu0 %813
        %815 = vmax.xlane.f32.xlu0 %v793
        %v816 = vpop.xlane.xlu0 %815
        %817 = vmax.xlane.f32.xlu0 %v794
        %v818 = vpop.xlane.xlu0 %817
        %819 = vmax.xlane.f32.xlu0 %v795
        %v820 = vpop.xlane.xlu0 %819
        %821 = vmax.xlane.f32.xlu0 %v796
        %v822 = vpop.xlane.xlu0 %821
        %823 = vmax.xlane.f32.xlu0 %v797
        %v824 = vpop.xlane.xlu0 %823
        %825 = vmax.xlane.f32.xlu0 %v798
        %v826 = vpop.xlane.xlu0 %825
        %827 = vmax.xlane.f32.xlu0 %v799
        %v828 = vpop.xlane.xlu0 %827
        %829 = vmax.xlane.f32.xlu0 %v800
        %v830 = vpop.xlane.xlu0 %829
        %831 = vmax.xlane.f32.xlu0 %v801
        %v832 = vpop.xlane.xlu0 %831
        %833 = vmax.xlane.f32.xlu0 %v802
        %v834 = vpop.xlane.xlu0 %833
        %v835 = vsub.f32 %v787, %v804
        %v836 = vsub.f32 %v788, %v806
        %v837 = vsub.f32 %v789, %v808
        %v838 = vsub.f32 %v790, %v810
        %v839 = vsub.f32 %v791, %v812
        %v840 = vsub.f32 %v792, %v814
        %v841 = vsub.f32 %v793, %v816
        %v842 = vsub.f32 %v794, %v818
        %v843 = vsub.f32 %v795, %v820
        %v844 = vsub.f32 %v796, %v822
        %v845 = vsub.f32 %v797, %v824
        %v846 = vsub.f32 %v798, %v826
        %v847 = vsub.f32 %v799, %v828
        %v848 = vsub.f32 %v800, %v830
        %v849 = vsub.f32 %v801, %v832
        %v850 = vsub.f32 %v802, %v834
        %v851 = vmul.f32 %v835, 1.442695
        %v852 = vpow.pop %v851
        %v853 = vmul.f32 %v836, 1.442695
        %v854 = vpow.pop %v853
        %v855 = vmul.f32 %v837, 1.442695
        %v856 = vpow.pop %v855
        %v857 = vmul.f32 %v838, 1.442695
        %v858 = vpow.pop %v857
        %v859 = vmul.f32 %v839, 1.442695
        %v860 = vpow.pop %v859
        %v861 = vmul.f32 %v840, 1.442695
        %v862 = vpow.pop %v861
        %v863 = vmul.f32 %v841, 1.442695
        %v864 = vpow.pop %v863
        %v865 = vmul.f32 %v842, 1.442695
        %v866 = vpow.pop %v865
        %v867 = vmul.f32 %v843, 1.442695
        %v868 = vpow.pop %v867
        %v869 = vmul.f32 %v844, 1.442695
        %v870 = vpow.pop %v869
        %v871 = vmul.f32 %v845, 1.442695
        %v872 = vpow.pop %v871
        %v873 = vmul.f32 %v846, 1.442695
        %v874 = vpow.pop %v873
        %v875 = vmul.f32 %v847, 1.442695
        %v876 = vpow.pop %v875
        %v877 = vmul.f32 %v848, 1.442695
        %v878 = vpow.pop %v877
        %v879 = vmul.f32 %v849, 1.442695
        %v880 = vpow.pop %v879
        %v881 = vmul.f32 %v850, 1.442695
        %v882 = vpow.pop %v881
        %883 = vadd.xlane.f32.xlu0 %v852
        %v884 = vpop.xlane.xlu0 %883
        %885 = vadd.xlane.f32.xlu0 %v854
        %v886 = vpop.xlane.xlu0 %885
        %887 = vadd.xlane.f32.xlu0 %v856
        %v888 = vpop.xlane.xlu0 %887
        %889 = vadd.xlane.f32.xlu0 %v858
        %v890 = vpop.xlane.xlu0 %889
        %891 = vadd.xlane.f32.xlu0 %v860
        %v892 = vpop.xlane.xlu0 %891
        %893 = vadd.xlane.f32.xlu0 %v862
        %v894 = vpop.xlane.xlu0 %893
        %895 = vadd.xlane.f32.xlu0 %v864
        %v896 = vpop.xlane.xlu0 %895
        %897 = vadd.xlane.f32.xlu0 %v866
        %v898 = vpop.xlane.xlu0 %897
        %899 = vadd.xlane.f32.xlu0 %v868
        %v900 = vpop.xlane.xlu0 %899
        %901 = vadd.xlane.f32.xlu0 %v870
        %v902 = vpop.xlane.xlu0 %901
        %903 = vadd.xlane.f32.xlu0 %v872
        %v904 = vpop.xlane.xlu0 %903
        %905 = vadd.xlane.f32.xlu0 %v874
        %v906 = vpop.xlane.xlu0 %905
        %907 = vadd.xlane.f32.xlu0 %v876
        %v908 = vpop.xlane.xlu0 %907
        %909 = vadd.xlane.f32.xlu0 %v878
        %v910 = vpop.xlane.xlu0 %909
        %911 = vadd.xlane.f32.xlu0 %v880
        %v912 = vpop.xlane.xlu0 %911
        %913 = vadd.xlane.f32.xlu0 %v882
        %v914 = vpop.xlane.xlu0 %913
        %v915 = vrcp.pop %v884
        %v916 = vrcp.pop %v886
        %v917 = vrcp.pop %v888
        %v918 = vrcp.pop %v890
        %v919 = vrcp.pop %v892
        %v920 = vrcp.pop %v894
        %v921 = vrcp.pop %v896
        %v922 = vrcp.pop %v898
        %v923 = vrcp.pop %v900
        %v924 = vrcp.pop %v902
        %v925 = vrcp.pop %v904
        %v926 = vrcp.pop %v906
        %v927 = vrcp.pop %v908
        %v928 = vrcp.pop %v910
        %v929 = vrcp.pop %v912
        %v930 = vrcp.pop %v914
        %v931 = vmul.f32 %v852, %v915
        %v932 = vmul.f32 %v854, %v916
        %v933 = vmul.f32 %v856, %v917
        %v934 = vmul.f32 %v858, %v918
        %v935 = vmul.f32 %v860, %v919
        %v936 = vmul.f32 %v862, %v920
        %v937 = vmul.f32 %v864, %v921
        %v938 = vmul.f32 %v866, %v922
        %v939 = vmul.f32 %v868, %v923
        %v940 = vmul.f32 %v870, %v924
        %v941 = vmul.f32 %v872, %v925
        %v942 = vmul.f32 %v874, %v926
        %v943 = vmul.f32 %v876, %v927
        %v944 = vmul.f32 %v878, %v928
        %v945 = vmul.f32 %v880, %v929
        %v946 = vmul.f32 %v882, %v930
        %947 = vmatpush.msra.mxu0 %v620
        %948 = vmatpush.msra.mxu0 %v617
        %949 = vmatpush.msra.mxu0 %v614
        %950 = vmatpush.msra.mxu0 %v611
        %951 = vmatpush.msra.mxu0 %v608
        %952 = vmatpush.msra.mxu0 %v605
        %953 = vmatpush.msra.mxu0 %v602
        %954 = vmatpush.msra.mxu0 %v599
        %955 = vmatpush.msra.mxu0 %v596
        %956 = vmatpush.msra.mxu0 %v593
        %957 = vmatpush.msra.mxu0 %v590
        %958 = vmatpush.msra.mxu0 %v587
        %959 = vmatpush.msra.mxu0 %v584
        %960 = vmatpush.msra.mxu0 %v581
        %961 = vmatpush.msra.mxu0 %v578
        %962 = vmatpush.msra.mxu0 %v575
        %963 = vmatmul.f32.gmra.mxu0 %v931
        %v964 = vpop.f32.mrf.mxu0
        %v965 = vadd.f32 0.0, %v964
        %966 = vmatmul.f32.gmra.mxu0 %v932
        %v967 = vpop.f32.mrf.mxu0
        %v968 = vadd.f32 0.0, %v967
        %969 = vmatmul.f32.gmra.mxu0 %v933
        %v970 = vpop.f32.mrf.mxu0
        %v971 = vadd.f32 0.0, %v970
        %972 = vmatmul.f32.gmra.mxu0 %v934
        %v973 = vpop.f32.mrf.mxu0
        %v974 = vadd.f32 0.0, %v973
        %975 = vmatmul.f32.gmra.mxu0 %v935
        %v976 = vpop.f32.mrf.mxu0
        %v977 = vadd.f32 0.0, %v976
        %978 = vmatmul.f32.gmra.mxu0 %v936
        %v979 = vpop.f32.mrf.mxu0
        %v980 = vadd.f32 0.0, %v979
        %981 = vmatmul.f32.gmra.mxu0 %v937
        %v982 = vpop.f32.mrf.mxu0
        %v983 = vadd.f32 0.0, %v982
        %984 = vmatmul.f32.gmra.mxu0 %v938
        %v985 = vpop.f32.mrf.mxu0
        %v986 = vadd.f32 0.0, %v985
        %987 = vmatmul.f32.gmra.mxu0 %v939
        %v988 = vpop.f32.mrf.mxu0
        %v989 = vadd.f32 0.0, %v988
        %990 = vmatmul.f32.gmra.mxu0 %v940
        %v991 = vpop.f32.mrf.mxu0
        %v992 = vadd.f32 0.0, %v991
        %993 = vmatmul.f32.gmra.mxu0 %v941
        %v994 = vpop.f32.mrf.mxu0
        %v995 = vadd.f32 0.0, %v994
        %996 = vmatmul.f32.gmra.mxu0 %v942
        %v997 = vpop.f32.mrf.mxu0
        %v998 = vadd.f32 0.0, %v997
        %999 = vmatmul.f32.gmra.mxu0 %v943
        %v1000 = vpop.f32.mrf.mxu0
        %v1001 = vadd.f32 0.0, %v1000
        %1002 = vmatmul.f32.gmra.mxu0 %v944
        %v1003 = vpop.f32.mrf.mxu0
        %v1004 = vadd.f32 0.0, %v1003
        %1005 = vmatmul.f32.gmra.mxu0 %v945
        %v1006 = vpop.f32.mrf.mxu0
        %v1007 = vadd.f32 0.0, %v1006
        %1008 = vmatmul.f32.gmra.mxu0 %v946
        %v1009 = vpop.f32.mrf.mxu0
        %v1010 = vadd.f32 0.0, %v1009
        %1011 = vdwg.mxu0
        %v1012 = vld [vmem:[#allocation2] sm:$0xff]
        %v1013 = vld [vmem:[#allocation2 + $0x8] sm:$0xff]
        %v1014 = vld [vmem:[#allocation2 + $0x10] sm:$0xff]
        %v1015 = vld [vmem:[#allocation2 + $0x18] sm:$0xff]
        %v1016 = vld [vmem:[#allocation2 + $0x20] sm:$0xff]
        %v1017 = vld [vmem:[#allocation2 + $0x28] sm:$0xff]
        %v1018 = vld [vmem:[#allocation2 + $0x30] sm:$0xff]
        %v1019 = vld [vmem:[#allocation2 + $0x38] sm:$0xff]
        %v1020 = vld [vmem:[#allocation2 + $0x40] sm:$0xff]
        %v1021 = vld [vmem:[#allocation2 + $0x48] sm:$0xff]
        %v1022 = vld [vmem:[#allocation2 + $0x50] sm:$0xff]
        %v1023 = vld [vmem:[#allocation2 + $0x58] sm:$0xff]
        %v1024 = vld [vmem:[#allocation2 + $0x60] sm:$0xff]
        %v1025 = vld [vmem:[#allocation2 + $0x68] sm:$0xff]
        %v1026 = vld [vmem:[#allocation2 + $0x70] sm:$0xff]
        %v1027 = vld [vmem:[#allocation2 + $0x78] sm:$0xff]
        %v1028 = vld [vmem:[%s321] sm:$0xff]
        %v1030 = vsel %vm622, %v965, 0
        %v1033 = vsel %vm622, %v968, 0
        %v1036 = vsel %vm622, %v971, 0
        %v1039 = vsel %vm622, %v974, 0
        %v1042 = vsel %vm622, %v977, 0
        %v1045 = vsel %vm622, %v980, 0
        %v1048 = vsel %vm622, %v983, 0
        %v1051 = vsel %vm622, %v986, 0
        %v1054 = vsel %vm622, %v989, 0
        %v1057 = vsel %vm622, %v992, 0
        %v1060 = vsel %vm622, %v995, 0
        %v1063 = vsel %vm622, %v998, 0
        %v1066 = vsel %vm622, %v1001, 0
        %v1069 = vsel %vm622, %v1004, 0
        %v1072 = vsel %vm622, %v1007, 0
        %v1075 = vsel %vm622, %v1010, 0
        %1077 = vmatpush.msra.mxu0 0.0
        %1078 = vmatpush.msra.mxu0 0.0
        %1079 = vmatpush.msra.mxu0 0.0
        %1080 = vmatpush.msra.mxu0 0.0
        %1081 = vmatpush.msra.mxu0 0.0
        %1082 = vmatpush.msra.mxu0 0.0
        %1083 = vmatpush.msra.mxu0 0.0
        %1084 = vmatpush.msra.mxu0 0.0
        %1085 = vmatpush.msra.mxu0 0.0
        %1086 = vmatpush.msra.mxu0 0.0
        %1087 = vmatpush.msra.mxu0 0.0
        %1088 = vmatpush.msra.mxu0 0.0
        %1089 = vmatpush.msra.mxu0 0.0
        %1090 = vmatpush.msra.mxu0 0.0
        %1091 = vmatpush.msra.mxu0 0.0
        %1092 = vmatpush.msra.mxu0 %v1028
        %1093 = vmatmul.f32.gmra.mxu0 %v1030
        %v1094 = vpop.f32.mrf.mxu0
        %v1095 = vadd.f32 0.0, %v1094
        %1096 = vmatmul.f32.gmra.mxu0 %v1033
        %v1097 = vpop.f32.mrf.mxu0
        %v1098 = vadd.f32 0.0, %v1097
        %1099 = vmatmul.f32.gmra.mxu0 %v1036
        %v1100 = vpop.f32.mrf.mxu0
        %v1101 = vadd.f32 0.0, %v1100
        %1102 = vmatmul.f32.gmra.mxu0 %v1039
        %v1103 = vpop.f32.mrf.mxu0
        %v1104 = vadd.f32 0.0, %v1103
        %1105 = vmatmul.f32.gmra.mxu0 %v1042
        %v1106 = vpop.f32.mrf.mxu0
        %v1107 = vadd.f32 0.0, %v1106
        %1108 = vmatmul.f32.gmra.mxu0 %v1045
        %v1109 = vpop.f32.mrf.mxu0
        %v1110 = vadd.f32 0.0, %v1109
        %1111 = vmatmul.f32.gmra.mxu0 %v1048
        %v1112 = vpop.f32.mrf.mxu0
        %v1113 = vadd.f32 0.0, %v1112
        %1114 = vmatmul.f32.gmra.mxu0 %v1051
        %v1115 = vpop.f32.mrf.mxu0
        %v1116 = vadd.f32 0.0, %v1115
        %1117 = vmatmul.f32.gmra.mxu0 %v1054
        %v1118 = vpop.f32.mrf.mxu0
        %v1119 = vadd.f32 0.0, %v1118
        %1120 = vmatmul.f32.gmra.mxu0 %v1057
        %v1121 = vpop.f32.mrf.mxu0
        %v1122 = vadd.f32 0.0, %v1121
        %1123 = vmatmul.f32.gmra.mxu0 %v1060
        %v1124 = vpop.f32.mrf.mxu0
        %v1125 = vadd.f32 0.0, %v1124
        %1126 = vmatmul.f32.gmra.mxu0 %v1063
        %v1127 = vpop.f32.mrf.mxu0
        %v1128 = vadd.f32 0.0, %v1127
        %1129 = vmatmul.f32.gmra.mxu0 %v1066
        %v1130 = vpop.f32.mrf.mxu0
        %v1131 = vadd.f32 0.0, %v1130
        %1132 = vmatmul.f32.gmra.mxu0 %v1069
        %v1133 = vpop.f32.mrf.mxu0
        %v1134 = vadd.f32 0.0, %v1133
        %1135 = vmatmul.f32.gmra.mxu0 %v1072
        %v1136 = vpop.f32.mrf.mxu0
        %v1137 = vadd.f32 0.0, %v1136
        %1138 = vmatmul.f32.gmra.mxu0 %v1075
        %v1139 = vpop.f32.mrf.mxu0
        %v1140 = vadd.f32 0.0, %v1139
        %1141 = vdwg.mxu0
        %v1142 = vadd.f32 %v1012, %v1095
        %v1143 = vadd.f32 %v1013, %v1098
        %v1144 = vadd.f32 %v1014, %v1101
        %v1145 = vadd.f32 %v1015, %v1104
        %v1146 = vadd.f32 %v1016, %v1107
        %v1147 = vadd.f32 %v1017, %v1110
        %v1148 = vadd.f32 %v1018, %v1113
        %v1149 = vadd.f32 %v1019, %v1116
        %v1150 = vadd.f32 %v1020, %v1119
        %v1151 = vadd.f32 %v1021, %v1122
        %v1152 = vadd.f32 %v1022, %v1125
        %v1153 = vadd.f32 %v1023, %v1128
        %v1154 = vadd.f32 %v1024, %v1131
        %v1155 = vadd.f32 %v1025, %v1134
        %v1156 = vadd.f32 %v1026, %v1137
        %v1157 = vadd.f32 %v1027, %v1140
        %1158 = vst.msk [vmem:[#allocation2] sm:$0xff] %vm368, %v1142
        %1159 = vst.msk [vmem:[#allocation2 + $0x8] sm:$0xff] %vm368, %v1143
        %1160 = vst.msk [vmem:[#allocation2 + $0x10] sm:$0xff] %vm368, %v1144
        %1161 = vst.msk [vmem:[#allocation2 + $0x18] sm:$0xff] %vm368, %v1145
        %1162 = vst.msk [vmem:[#allocation2 + $0x20] sm:$0xff] %vm368, %v1146
        %1163 = vst.msk [vmem:[#allocation2 + $0x28] sm:$0xff] %vm368, %v1147
        %1164 = vst.msk [vmem:[#allocation2 + $0x30] sm:$0xff] %vm368, %v1148
        %1165 = vst.msk [vmem:[#allocation2 + $0x38] sm:$0xff] %vm368, %v1149
        %1166 = vst.msk [vmem:[#allocation2 + $0x40] sm:$0xff] %vm368, %v1150
        %1167 = vst.msk [vmem:[#allocation2 + $0x48] sm:$0xff] %vm368, %v1151
        %1168 = vst.msk [vmem:[#allocation2 + $0x50] sm:$0xff] %vm368, %v1152
        %1169 = vst.msk [vmem:[#allocation2 + $0x58] sm:$0xff] %vm368, %v1153
        %1170 = vst.msk [vmem:[#allocation2 + $0x60] sm:$0xff] %vm368, %v1154
        %1171 = vst.msk [vmem:[#allocation2 + $0x68] sm:$0xff] %vm368, %v1155
        %1172 = vst.msk [vmem:[#allocation2 + $0x70] sm:$0xff] %vm368, %v1156
        %1173 = vst.msk [vmem:[#allocation2 + $0x78] sm:$0xff] %vm368, %v1157
        %p1174 = scmp.eq.s32.totalorder %s20, 3
        // Predicated region
        $region79: #{tpu_custom_call.1} parent=69 // pred_check
          %p1175 = pneg %p1174
        $region80: #{tpu_custom_call.1} parent=69 // pred_check_branch
          %1177 = sbr.rel (%p1175) target = $region82
        $region81: #{tpu_custom_call.1} parent=69 // pred_region
          %v1178 = vld [vmem:[#allocation2] sm:$0xff]
          %v1179 = vld [vmem:[#allocation2 + $0x8] sm:$0xff]
          %v1180 = vld [vmem:[#allocation2 + $0x10] sm:$0xff]
          %v1181 = vld [vmem:[#allocation2 + $0x18] sm:$0xff]
          %v1182 = vld [vmem:[#allocation2 + $0x20] sm:$0xff]
          %v1183 = vld [vmem:[#allocation2 + $0x28] sm:$0xff]
          %v1184 = vld [vmem:[#allocation2 + $0x30] sm:$0xff]
          %v1185 = vld [vmem:[#allocation2 + $0x38] sm:$0xff]
          %v1186 = vld [vmem:[#allocation2 + $0x40] sm:$0xff]
          %v1187 = vld [vmem:[#allocation2 + $0x48] sm:$0xff]
          %v1188 = vld [vmem:[#allocation2 + $0x50] sm:$0xff]
          %v1189 = vld [vmem:[#allocation2 + $0x58] sm:$0xff]
          %v1190 = vld [vmem:[#allocation2 + $0x60] sm:$0xff]
          %v1191 = vld [vmem:[#allocation2 + $0x68] sm:$0xff]
          %v1192 = vld [vmem:[#allocation2 + $0x70] sm:$0xff]
          %v1193 = vld [vmem:[#allocation2 + $0x78] sm:$0xff]
          %v1194 = vld [vmem:[%s3] sm:$0x1]
          %v1196 = vperm.slane %v1194, 0
          %v1198 = vadd.f32 %v1178, %v1196
          %v1199 = vadd.f32 %v1179, %v1196
          %v1200 = vadd.f32 %v1180, %v1196
          %v1201 = vadd.f32 %v1181, %v1196
          %v1202 = vadd.f32 %v1182, %v1196
          %v1203 = vadd.f32 %v1183, %v1196
          %v1204 = vadd.f32 %v1184, %v1196
          %v1205 = vadd.f32 %v1185, %v1196
          %v1206 = vadd.f32 %v1186, %v1196
          %v1207 = vadd.f32 %v1187, %v1196
          %v1208 = vadd.f32 %v1188, %v1196
          %v1209 = vadd.f32 %v1189, %v1196
          %v1210 = vadd.f32 %v1190, %v1196
          %v1211 = vadd.f32 %v1191, %v1196
          %v1212 = vadd.f32 %v1192, %v1196
          %v1213 = vadd.f32 %v1193, %v1196
          %1214 = vst.msk [vmem:[%s326] sm:$0xff] %vm368, %v1198
          %1215 = vst.msk [vmem:[%s326 + $0x8] sm:$0xff] %vm368, %v1199
          %1216 = vst.msk [vmem:[%s326 + $0x10] sm:$0xff] %vm368, %v1200
          %1217 = vst.msk [vmem:[%s326 + $0x18] sm:$0xff] %vm368, %v1201
          %1218 = vst.msk [vmem:[%s326 + $0x20] sm:$0xff] %vm368, %v1202
          %1219 = vst.msk [vmem:[%s326 + $0x28] sm:$0xff] %vm368, %v1203
          %1220 = vst.msk [vmem:[%s326 + $0x30] sm:$0xff] %vm368, %v1204
          %1221 = vst.msk [vmem:[%s326 + $0x38] sm:$0xff] %vm368, %v1205
          %1222 = vst.msk [vmem:[%s326 + $0x40] sm:$0xff] %vm368, %v1206
          %1223 = vst.msk [vmem:[%s326 + $0x48] sm:$0xff] %vm368, %v1207
          %1224 = vst.msk [vmem:[%s326 + $0x50] sm:$0xff] %vm368, %v1208
          %1225 = vst.msk [vmem:[%s326 + $0x58] sm:$0xff] %vm368, %v1209
          %1226 = vst.msk [vmem:[%s326 + $0x60] sm:$0xff] %vm368, %v1210
          %1227 = vst.msk [vmem:[%s326 + $0x68] sm:$0xff] %vm368, %v1211
          %1228 = vst.msk [vmem:[%s326 + $0x70] sm:$0xff] %vm368, %v1212
          %1229 = vst.msk [vmem:[%s326 + $0x78] sm:$0xff] %vm368, %v1213
        $region82: #{tpu_custom_call.1} parent=69 // pred_fallthru
          _
        %p1230 = scmp.lt.s32.totalorder %s19, 1
        %s1231 = scalar_select %p1230, %s19, 1
        %s1232 = smul.addr %s1231, 16
        %s1233 = smul.addr %s1232, 8
        %s1234 = scalar_lea.vmem %s4, %s1233
        // Predicated region
        $region83: #{tpu_custom_call.1} parent=69 // pred_check
          %p1235 = pneg %p144
        $region84: #{tpu_custom_call.1} parent=69 // pred_check_branch
          %1237 = sbr.rel (%p1235) target = $region86
        $region85: #{tpu_custom_call.1} parent=69 // pred_region
          _
        $region86: #{tpu_custom_call.1} parent=69 // pred_fallthru
          _
      $region70: #{tpu_custom_call.1} parent=5 // pred_fallthru
        _
      %p1238 = scmp.le.s32.totalorder 2, %s10
      // Predicated region
      $region87: #{tpu_custom_call.1} parent=5 // pred_check
        %p1239 = pneg %p1238
      $region88: #{tpu_custom_call.1} parent=5 // pred_check_branch
        %1241 = sbr.rel (%p1239) target = $region90
      $region89: #{tpu_custom_call.1} parent=5 // pred_region
        %s1242 = ssub.s32 %s10, 2
        // Predicated region
        $region91: #{tpu_custom_call.1} parent=89 // pred_check
          %p1243 = pneg %p150
        $region92: #{tpu_custom_call.1} parent=89 // pred_check_branch
          %1245 = sbr.rel (%p1243) target = $region94
        $region93: #{tpu_custom_call.1} parent=89 // pred_region
          %p1246 = scmp.lt.s32.totalorder %s21, 1
          %s1247 = scalar_select %p1246, %s21, 1
          %s1248 = smul.addr %s1247, 16
          %s1249 = smul.addr %s1248, 8
          %s1250 = scalar_lea.vmem %s4, %s1249
        $region94: #{tpu_custom_call.1} parent=89 // pred_fallthru
          _
      $region90: #{tpu_custom_call.1} parent=5 // pred_fallthru
        _
    $region6: #{tpu_custom_call.1} parent=1 // loop_footer
      %s14 = sadd.s32 1, %s10
    $region7: #{tpu_custom_call.1} parent=1 // loop_footer_branch
      %9 = sbr.rel target = $region3
    $region8: #{tpu_custom_call.1} parent=1 // loop_exit
      _

</llo_original>
